<compile_context>
chip_gen: v7x
topology: tpu7x:2x2x1
jax: 0.10.0
libtpu: 0.0.40
codegen_flags: <defaults>
</compile_context>

<pallas_src>
import functools

import jax
import jax.numpy as jnp
from jax.experimental import pallas as pl
from jax.experimental.pallas import tpu as pltpu

_LANE = 128


def _layernorm2d_kernel(x_ref, w_ref, b_ref, o_ref, *, eps):
    # x_ref: (B_N, C, T_TILE) block; w_ref / b_ref: (1, C, 1), VMEM-resident.
    x = x_ref[...].astype(jnp.float32)
    mu = jnp.mean(x, axis=1, keepdims=True)                       # (B_N, 1, T)
    var = jnp.mean(jnp.square(x - mu), axis=1, keepdims=True)     # (B_N, 1, T)
    y = (x - mu) * jax.lax.rsqrt(var + eps)                       # (B_N, C, T)

    if o_ref.dtype == jnp.bfloat16:
        # bf16 VPU epilogue (v6e/v7x): halves vreg/store traffic of the affine.
        y = y.astype(jnp.bfloat16)
        w = w_ref[...].astype(jnp.bfloat16)
        b = b_ref[...].astype(jnp.bfloat16)
    else:
        w = w_ref[...].astype(jnp.float32)
        b = b_ref[...].astype(jnp.float32)
    o_ref[...] = (w * y + b).astype(o_ref.dtype)


def _choose_spatial_tile(C, T, max_lanes=2048, block_budget_bytes=2 << 20):
    """Largest multiple-of-128 divisor of T within the per-block VMEM budget."""
    if T % _LANE != 0:
        # TODO(synk): ragged H*W (not a multiple of 128) falls back to one
        # full-width spatial block instead of a padded/masked tail tile.
        return T
    bytes_per_lane = C * 4  # f32 temporaries dominate the per-lane footprint
    cap = min(T, max_lanes, max(_LANE, (block_budget_bytes // bytes_per_lane) // _LANE * _LANE))
    best = _LANE
    t = _LANE
    while t <= cap:
        if T % t == 0:
            best = t
        t += _LANE
    return best


def _choose_batch_tile(N, C, t_tile, target_bytes=1 << 20):
    """Pack multiple batch rows per block when a single (C, t_tile) slab is tiny."""
    b_n = 1
    while b_n < N and N % (2 * b_n) == 0 and (2 * b_n) * C * t_tile * 4 <= target_bytes:
        b_n *= 2
    return b_n


def layernorm2d(x, weight, bias, eps=1e-6):
    """LayerNorm over the channel dim of an NCHW tensor (PyTorch LayerNorm2d)."""
    N, C, H, W = x.shape
    T = H * W
    x2 = x.reshape(N, C, T)
    w2 = weight.reshape(1, C, 1)
    b2 = bias.reshape(1, C, 1)

    t_tile = _choose_spatial_tile(C, T)
    b_n = _choose_batch_tile(N, C, t_tile)
    grid = (N // b_n, T // t_tile)

    kernel = functools.partial(_layernorm2d_kernel, eps=eps)

    out = pl.pallas_call(
        kernel,
        out_shape=jax.ShapeDtypeStruct((N, C, T), x.dtype),
        grid_spec=pltpu.PrefetchScalarGridSpec(
            num_scalar_prefetch=0,
            grid=grid,
            in_specs=[
                pl.BlockSpec((b_n, C, t_tile), lambda n, t: (n, 0, t)),
                pl.BlockSpec((1, C, 1), lambda n, t: (0, 0, 0)),
                pl.BlockSpec((1, C, 1), lambda n, t: (0, 0, 0)),
            ],
            out_specs=pl.BlockSpec((b_n, C, t_tile), lambda n, t: (n, 0, t)),
        ),
        compiler_params=pltpu.CompilerParams(
            # Every block is independent: both axes parallel (megacore / v7x 2-TC).
            dimension_semantics=("parallel", "parallel"),
        ),
    )(x2, w2, b2)

    return out.reshape(N, C, H, W)


def _reference(x, weight, bias, eps=1e-6):
    mu = jnp.mean(x, axis=1, keepdims=True)
    var = jnp.mean((x - mu) ** 2, axis=1, keepdims=True)
    y = (x - mu) / jnp.sqrt(var + eps)
    return weight[None, :, None, None] * y + bias[None, :, None, None]


if __name__ == "__main__":
    N, C, H, W = 2, 4, 16, 16
    key = jax.random.PRNGKey(0)
    x = jax.random.normal(key, (N, C, H, W), dtype=jnp.float32)

    # Deterministic parameter init, matching nn.Parameter(torch.ones/zeros(C)).
    weight = jnp.ones((C,), dtype=jnp.float32)
    bias = jnp.zeros((C,), dtype=jnp.float32)

    out = layernorm2d(x, weight, bias, eps=1e-6)
    out = jax.block_until_ready(out)

    ref = _reference(x, weight, bias, eps=1e-6)
    assert out.shape == (N, C, H, W)
    assert jnp.allclose(out, ref, atol=1e-5, rtol=1e-5)

    print("KERNEL_OK")
</pallas_src>

<mosaic_0001>
module attributes {stable_mosaic.version = 11 : i64} {
  func.func @_layernorm2d_kernel(%arg0: i32, %arg1: i32, %arg2: memref<2x4x256xf32, #tpu.memory_space<vmem>>, %arg3: memref<1x4x1xf32, #tpu.memory_space<vmem>>, %arg4: memref<1x4x1xf32, #tpu.memory_space<vmem>>, %arg5: memref<2x4x256xf32, #tpu.memory_space<vmem>>) attributes {dimension_semantics = [#tpu.dimension_semantics<parallel>, #tpu.dimension_semantics<parallel>], iteration_bounds = array<i64: 1, 1>, scalar_prefetch = 0 : i64, scratch_operands = 0 : i64, tpu.core_type = #tpu.core_type<tc>, window_params = [{transform_indices = @transform_0, window_bounds = array<i64: 2, 4, 256>}, {pipeline_mode = #tpu.pipeline_mode<synchronous>, transform_indices = @transform_1, window_bounds = array<i64: 1, 4, 1>}, {pipeline_mode = #tpu.pipeline_mode<synchronous>, transform_indices = @transform_2, window_bounds = array<i64: 1, 4, 1>}, {transform_indices = @transform_3, window_bounds = array<i64: 2, 4, 256>}]} {
    %c0 = arith.constant 0 : index
    %c0_0 = arith.constant 0 : index
    %c0_1 = arith.constant 0 : index
    %0 = vector.load %arg2[%c0, %c0_0, %c0_1] : memref<2x4x256xf32, #tpu.memory_space<vmem>>, vector<2x4x256xf32>
    %cst = arith.constant dense<0.000000e+00> : vector<2x256xf32>
    %1 = vector.multi_reduction <add>, %0, %cst [1] : vector<2x4x256xf32> to vector<2x256xf32>
    %2 = vector.shape_cast %1 : vector<2x256xf32> to vector<2x1x256xf32>
    %cst_2 = arith.constant 4.000000e+00 : f32
    %3 = vector.broadcast %cst_2 : f32 to vector<2x1x256xf32>
    %4 = arith.divf %2, %3 : vector<2x1x256xf32>
    %5 = vector.broadcast %4 : vector<2x1x256xf32> to vector<2x4x256xf32>
    %6 = arith.subf %0, %5 : vector<2x4x256xf32>
    %7 = arith.mulf %6, %6 : vector<2x4x256xf32>
    %cst_3 = arith.constant dense<0.000000e+00> : vector<2x256xf32>
    %8 = vector.multi_reduction <add>, %7, %cst_3 [1] : vector<2x4x256xf32> to vector<2x256xf32>
    %9 = vector.shape_cast %8 : vector<2x256xf32> to vector<2x1x256xf32>
    %cst_4 = arith.constant 4.000000e+00 : f32
    %10 = vector.broadcast %cst_4 : f32 to vector<2x1x256xf32>
    %11 = arith.divf %9, %10 : vector<2x1x256xf32>
    %12 = vector.broadcast %4 : vector<2x1x256xf32> to vector<2x4x256xf32>
    %13 = arith.subf %0, %12 : vector<2x4x256xf32>
    %cst_5 = arith.constant 9.99999997E-7 : f32
    %14 = vector.broadcast %cst_5 : f32 to vector<2x1x256xf32>
    %15 = arith.addf %11, %14 : vector<2x1x256xf32>
    %16 = math.rsqrt %15 : vector<2x1x256xf32>
    %17 = vector.broadcast %16 : vector<2x1x256xf32> to vector<2x4x256xf32>
    %18 = arith.mulf %13, %17 : vector<2x4x256xf32>
    %c0_6 = arith.constant 0 : index
    %c0_7 = arith.constant 0 : index
    %c0_8 = arith.constant 0 : index
    %19 = vector.load %arg3[%c0_6, %c0_7, %c0_8] : memref<1x4x1xf32, #tpu.memory_space<vmem>>, vector<1x4x1xf32>
    %c0_9 = arith.constant 0 : index
    %c0_10 = arith.constant 0 : index
    %c0_11 = arith.constant 0 : index
    %20 = vector.load %arg4[%c0_9, %c0_10, %c0_11] : memref<1x4x1xf32, #tpu.memory_space<vmem>>, vector<1x4x1xf32>
    %21 = vector.broadcast %19 : vector<1x4x1xf32> to vector<2x4x256xf32>
    %22 = arith.mulf %21, %18 : vector<2x4x256xf32>
    %23 = vector.broadcast %20 : vector<1x4x1xf32> to vector<2x4x256xf32>
    %24 = arith.addf %22, %23 : vector<2x4x256xf32>
    %c0_12 = arith.constant 0 : index
    %c0_13 = arith.constant 0 : index
    %c0_14 = arith.constant 0 : index
    %25 = vector.load %arg5[%c0_12, %c0_13, %c0_14] : memref<2x4x256xf32, #tpu.memory_space<vmem>>, vector<2x4x256xf32>
    tpu.vector_store %arg5[%c0_12, %c0_13, %c0_14], %24 {strides = array<i32>} : memref<2x4x256xf32, #tpu.memory_space<vmem>>, vector<2x4x256xf32>,
    return
  }
  func.func @transform_0(%arg0: i32, %arg1: i32) -> (i32, i32, i32) {
    %c0_i32 = arith.constant 0 : i32
    %c0_i32_0 = arith.constant 0 : i32
    return %arg0, %c0_i32, %arg1 : i32, i32, i32
  }
  func.func @transform_1(%arg0: i32, %arg1: i32) -> (i32, i32, i32) {
    %c0_i32 = arith.constant 0 : i32
    %c0_i32_0 = arith.constant 0 : i32
    %c0_i32_1 = arith.constant 0 : i32
    %c0_i32_2 = arith.constant 0 : i32
    return %c0_i32, %c0_i32_0, %c0_i32_1 : i32, i32, i32
  }
  func.func @transform_2(%arg0: i32, %arg1: i32) -> (i32, i32, i32) {
    %c0_i32 = arith.constant 0 : i32
    %c0_i32_0 = arith.constant 0 : i32
    %c0_i32_1 = arith.constant 0 : i32
    %c0_i32_2 = arith.constant 0 : i32
    return %c0_i32, %c0_i32_0, %c0_i32_1 : i32, i32, i32
  }
  func.func @transform_3(%arg0: i32, %arg1: i32) -> (i32, i32, i32) {
    %c0_i32 = arith.constant 0 : i32
    %c0_i32_0 = arith.constant 0 : i32
    return %arg0, %c0_i32, %arg1 : i32, i32, i32
  }
}

</mosaic_0001>

<llo_original>
// kernel: tpu_custom_call.1
$region0: #{tpu_custom_call.1}
  #allocation0 [shape = 'u32[]', space=smem, size = 0x4, offset = 0x4, fixed_abs, tag = 'smem constant byte address 0x4 - core index']
  #allocation1 [shape = 'u32[144,128]{1,0:T(1,128)}', space=vmem, size = 0x12000, scoped, tag = 'internal scratch']
  %s0 = inlined_call_operand.hbm [shape: f32[2,4,256], index: 0, kind: input, shape index: {}]
  %s1 = inlined_call_operand.vmem [shape: f32[1,4,1], index: 1, kind: input, shape index: {}]
  %s2 = inlined_call_operand.vmem [shape: f32[1,4,1], index: 2, kind: input, shape index: {}]
  %s3 = inlined_call_operand.hbm [shape: f32[2,4,256], index: 3, kind: output, shape index: {}]
  %s4 = sld [smem:[#allocation0]]
  $region26: #{tpu_custom_call.1} parent=0
    _
  %s6 = ssub.s32 1, %s4
  %s7 = scalar_select 0, %s6, %s4
  $region1: #{tpu_custom_call.1} parent=0
    #allocation2 [shape = 'u8[8192]{0}', space=vmem, size = 0x2000, scoped, tag = 'input window, operand 0, single buffered']
    #allocation3 [shape = 's32[1]{0}', space=sflag, size = 0x4, scoped, tag = 'scoped memory for tpu_custom_call.1']
    #allocation4 [shape = 's32[1]{0}', space=sflag, size = 0x4, scoped, tag = 'scoped memory for tpu_custom_call.1']
    #allocation5 [shape = 'u8[8192]{0}', space=vmem, size = 0x2000, scoped, tag = 'output window, operand 0, single buffered']
    %8 = vsyncpa [#allocation3], 0
    %9 = vsyncpa [#allocation4], 0
    // Predicated region
    $region2: #{tpu_custom_call.1} parent=1 // pred_check
      _
    $region3: #{tpu_custom_call.1} parent=1 // pred_check_branch
      %11 = sbr.rel (0) target = $region5
    $region4: #{tpu_custom_call.1} parent=1 // pred_region
      %s13 = ssub.s32 256, 256
      %14 = vsyncadd [#allocation3], %s13
      %s15 = sshll.u32 [#allocation2], 4
      %s16 = int_to_ptr.vmem [resolvable:$true] %s15
      %21 = dma.hbm_to_vmem [thread:$0]  %s0, 256, %s16, [#allocation3], 128, 128, 8
    $region5: #{tpu_custom_call.1} parent=1 // pred_fallthru
      _
    // Predicated region
    $region6: #{tpu_custom_call.1} parent=1 // pred_check
      _
    $region7: #{tpu_custom_call.1} parent=1 // pred_check_branch
      %23 = sbr.rel (0) target = $region9
    $region8: #{tpu_custom_call.1} parent=1 // pred_region
      _
    $region9: #{tpu_custom_call.1} parent=1 // pred_fallthru
      _
    // Predicated region
    $region10: #{tpu_custom_call.1} parent=1 // pred_check
      _
    $region11: #{tpu_custom_call.1} parent=1 // pred_check_branch
      %25 = sbr.rel (0) target = $region13
    $region12: #{tpu_custom_call.1} parent=1 // pred_region
      _
    $region13: #{tpu_custom_call.1} parent=1 // pred_fallthru
      _
    // Predicated region
    $region14: #{tpu_custom_call.1} parent=1 // pred_check
      _
    $region15: #{tpu_custom_call.1} parent=1 // pred_check_branch
      %27 = sbr.rel (0) target = $region17
    $region16: #{tpu_custom_call.1} parent=1 // pred_region
      %28 = dma.done [#allocation3], 256
    $region17: #{tpu_custom_call.1} parent=1 // pred_fallthru
      _
    %v29 = vld [vmem:[#allocation2] sm:$0xff]
    %v30 = vld [vmem:[#allocation2 + $0x8] sm:$0xff]
    %v33 = vcombine.high %v29, %v29
    %v34 = vcombine.high %v30, %v30
    %vm37 = vcmask 1043456
    %v38 = vsel %vm37, %v29, 0.0
    %v39 = vrot.slane %v38, 4
    %v40 = vadd.f32 %v38, %v39
    %v41 = vrot.slane %v40, 2
    %v42 = vadd.f32 %v40, %v41
    %v43 = vrot.slane %v42, 1
    %v44 = vadd.f32 %v42, %v43
    %v45 = vsel %vm37, %v33, 0.0
    %v46 = vrot.slane %v45, 4
    %v47 = vadd.f32 %v45, %v46
    %v48 = vrot.slane %v47, 2
    %v49 = vadd.f32 %v47, %v48
    %v50 = vrot.slane %v49, 1
    %v51 = vadd.f32 %v49, %v50
    %v52 = vsel %vm37, %v30, 0.0
    %v53 = vrot.slane %v52, 4
    %v54 = vadd.f32 %v52, %v53
    %v55 = vrot.slane %v54, 2
    %v56 = vadd.f32 %v54, %v55
    %v57 = vrot.slane %v56, 1
    %v58 = vadd.f32 %v56, %v57
    %v59 = vsel %vm37, %v34, 0.0
    %v60 = vrot.slane %v59, 4
    %v61 = vadd.f32 %v59, %v60
    %v62 = vrot.slane %v61, 2
    %v63 = vadd.f32 %v61, %v62
    %v64 = vrot.slane %v63, 1
    %v65 = vadd.f32 %v63, %v64
    %v66 = vrcp.pop 4.0
    %v67 = vmul.f32 %v44, %v66
    %v68 = vmul.f32 %v51, %v66
    %v69 = vmul.f32 %v58, %v66
    %v70 = vmul.f32 %v65, %v66
    %v75 = vcombine.low %v67, %v68
    %v76 = vcombine.low %v69, %v70
    %v79 = vsub.f32 %v29, %v75
    %v80 = vsub.f32 %v30, %v76
    %v81 = vmul.f32 %v79, %v79
    %v82 = vmul.f32 %v80, %v80
    %v85 = vcombine.high %v81, %v81
    %v86 = vcombine.high %v82, %v82
    %v89 = vsel %vm37, %v81, 0.0
    %v90 = vrot.slane %v89, 4
    %v91 = vadd.f32 %v89, %v90
    %v92 = vrot.slane %v91, 2
    %v93 = vadd.f32 %v91, %v92
    %v94 = vrot.slane %v93, 1
    %v95 = vadd.f32 %v93, %v94
    %v96 = vsel %vm37, %v85, 0.0
    %v97 = vrot.slane %v96, 4
    %v98 = vadd.f32 %v96, %v97
    %v99 = vrot.slane %v98, 2
    %v100 = vadd.f32 %v98, %v99
    %v101 = vrot.slane %v100, 1
    %v102 = vadd.f32 %v100, %v101
    %v103 = vsel %vm37, %v82, 0.0
    %v104 = vrot.slane %v103, 4
    %v105 = vadd.f32 %v103, %v104
    %v106 = vrot.slane %v105, 2
    %v107 = vadd.f32 %v105, %v106
    %v108 = vrot.slane %v107, 1
    %v109 = vadd.f32 %v107, %v108
    %v110 = vsel %vm37, %v86, 0.0
    %v111 = vrot.slane %v110, 4
    %v112 = vadd.f32 %v110, %v111
    %v113 = vrot.slane %v112, 2
    %v114 = vadd.f32 %v112, %v113
    %v115 = vrot.slane %v114, 1
    %v116 = vadd.f32 %v114, %v115
    %v117 = vmul.f32 %v95, %v66
    %v118 = vmul.f32 %v102, %v66
    %v119 = vmul.f32 %v109, %v66
    %v120 = vmul.f32 %v116, %v66
    %v121 = vadd.f32 %v117, 1e-06
    %v122 = vadd.f32 %v118, 1e-06
    %v123 = vadd.f32 %v119, 1e-06
    %v124 = vadd.f32 %v120, 1e-06
    %v125 = vrsqrt.pop %v121
    %v126 = vrsqrt.pop %v122
    %v127 = vrsqrt.pop %v123
    %v128 = vrsqrt.pop %v124
    %v133 = vcombine.low %v125, %v126
    %v134 = vcombine.low %v127, %v128
    %v137 = vmul.f32 %v79, %v133
    %v138 = vmul.f32 %v80, %v134
    %v139 = vld [vmem:[%s1] sm:$0xf]
    %v140 = vld [vmem:[%s2] sm:$0xf]
    %142 = vset.pattern.permute.xlu0 0
    %143 = vperm.xlu0 %142, %v139
    %v144 = vpop.permute.xlu0 %143
    %v148 = vcombine.high %v137, %v137
    %v149 = vcombine.high %v138, %v138
    %v152 = vmul.f32 %v144, %v137
    %v153 = vmul.f32 %v144, %v148
    %v154 = vmul.f32 %v144, %v138
    %v155 = vmul.f32 %v144, %v149
    %157 = vset.pattern.permute.xlu0 0
    %158 = vperm.xlu0 %157, %v140
    %v159 = vpop.permute.xlu0 %158
    %v161 = vadd.f32 %v152, %v159
    %v162 = vadd.f32 %v153, %v159
    %v163 = vadd.f32 %v154, %v159
    %v164 = vadd.f32 %v155, %v159
    %v169 = vcombine.low %v161, %v162
    %v170 = vcombine.low %v163, %v164
    %173 = vst [vmem:[#allocation5] sm:$0xff] %v169
    %174 = vst [vmem:[#allocation5 + $0x8] sm:$0xff] %v170
    // Predicated region
    $region18: #{tpu_custom_call.1} parent=1 // pred_check
      _
    $region19: #{tpu_custom_call.1} parent=1 // pred_check_branch
      %176 = sbr.rel (0) target = $region21
    $region20: #{tpu_custom_call.1} parent=1 // pred_region
      %s178 = ssub.s32 256, 256
      %179 = vsyncadd [#allocation4], %s178
      %s180 = sshll.u32 [#allocation5], 4
      %s181 = int_to_ptr.vmem [resolvable:$true] %s180
      %186 = dma.vmem_to_hbm [thread:$0]  %s181, 256, %s3, [#allocation4], 128, 128, 8
    $region21: #{tpu_custom_call.1} parent=1 // pred_fallthru
      _
    // Predicated region
    $region22: #{tpu_custom_call.1} parent=1 // pred_check
      _
    $region23: #{tpu_custom_call.1} parent=1 // pred_check_branch
      %188 = sbr.rel (0) target = $region25
    $region24: #{tpu_custom_call.1} parent=1 // pred_region
      %189 = dma.done [#allocation4], 256
    $region25: #{tpu_custom_call.1} parent=1 // pred_fallthru
      _
    %190 = vsyncpa [#allocation3], 1
    %191 = vsyncpa [#allocation4], 1

</llo_original>
